<compile_context>
chip_gen: v7x
topology: tpu7x:2x2x1
jax: 0.10.0
libtpu: 0.0.40
codegen_flags: <defaults>
</compile_context>

<pallas_src>
import functools

import jax
import jax.numpy as jnp
from jax.experimental import pallas as pl
from jax.experimental.pallas import tpu as pltpu

_LANE = 128


def _round_up(n, m):
    return -(-n // m) * m


def _block_diag(w, p):
    """(I, O) -> (p*I, p*O) block-diagonal with `w` repeated on the diagonal."""
    if p == 1:
        return w
    i, o = w.shape
    big = jnp.zeros((p, i, p, o), w.dtype)
    idx = jnp.arange(p)
    big = big.at[idx, :, idx, :].set(w)
    return big.reshape(p * i, p * o)


def _tile_rows(rows, p, in_f, hl, out_f, in_itemsize, out_itemsize, block_b):
    """Pick the packed-row tile size under a conservative VMEM budget."""
    pad = lambda n: _round_up(n, _LANE)
    # Double-buffered x/out tiles + f32 temporaries (h, y, casts) per packed row.
    row_bytes = (2 * pad(p * in_f) * in_itemsize
                 + 2 * pad(p * out_f) * out_itemsize
                 + 2 * pad(p * hl) * 4
                 + pad(p * out_f) * 4
                 + pad(p * in_f) * 4)
    budget = 20 * 1024 * 1024          # head-room under the 32 MiB limit we request
    tr = min(max(block_b // p, 8), max(budget // row_bytes, 8))
    tr = max(8, (tr // 8) * 8)
    tr = min(tr, _round_up(rows, 8))
    # Prefer >=2 grid steps on big batches so the batch axis can shard across
    # both TensorCores on v7x (dimension_semantics=("parallel",)).
    if tr >= rows and rows >= 4096:
        tr = _round_up(-(-rows // 2), 8)
    return tr


def _mlp_kernel(x_ref, w1_ref, b1_ref, w2_ref, b2_ref, o_ref):
    """Fused fc1 -> ReLU -> fc2 on one packed batch tile.

      x_ref  : (tr, P*IN)          input dtype (cast to weight dtype in-kernel)
      w1_ref : (P*IN, P*HL)        compute dtype (block-diagonal)
      b1_ref : (1,  P*HL)  f32
      w2_ref : (P*HL, P*OUT)       compute dtype (block-diagonal)
      b2_ref : (1,  P*OUT) f32
      o_ref  : (tr, P*OUT)         out dtype
    """
    x = x_ref[...].astype(w1_ref.dtype)          # cast (if any) hidden under DMA
    h = jnp.dot(x, w1_ref[...], preferred_element_type=jnp.float32)
    h = jnp.maximum(h + b1_ref[...], 0.0)        # bias + ReLU in f32 on the VPU
    y = jnp.dot(h.astype(w2_ref.dtype), w2_ref[...],
                preferred_element_type=jnp.float32)
    o_ref[...] = (y + b2_ref[...]).astype(o_ref.dtype)


@functools.partial(jax.jit, static_argnames=("block_b", "out_dtype", "compute_dtype"))
def net_forward(x, w1, b1, w2, b2, *, block_b=32768, out_dtype=jnp.bfloat16,
                compute_dtype=None):
    """x (B, 30) -> (B, 20).  Weights are stored (in, out), i.e. pre-transposed
    relative to PyTorch's (out, in) layout.

    out_dtype      : output dtype (bf16 default halves output HBM writeback;
                     use jnp.float32 to match the PyTorch module exactly).
    compute_dtype  : matmul operand dtype (None -> x.dtype, i.e. f32 matmuls).
    block_b        : max original batch rows processed per grid step.
    """
    B, IN = x.shape
    HL = w1.shape[1]
    OUT = w2.shape[1]

    # ---- Row packing factor: P*max(IN,HL,OUT) <= 128 keeps MXU cost identical
    # to the lane-padded unpacked kernel while densifying DMA rows/stores.
    P = max(1, 128 // max(IN, HL, OUT))
    align = 8 * P
    if B % align == 0:
        b_pad = B
    elif B <= 32768:
        b_pad = _round_up(B, align)     # cheap one-off pad of a small batch
    else:
        # Large ragged batch: a full jnp.pad pass over x costs more than the
        # packing saves -> unpacked layout; Pallas handles the ragged tail.
        P, align, b_pad = 1, 8, B

    if b_pad != B:
        x = jnp.pad(x, ((0, b_pad - B), (0, 0)))
    rows = b_pad // P
    xp = x.reshape(rows, P * IN)        # free row-major reshape, no extra HBM pass

    compute = jnp.dtype(compute_dtype) if compute_dtype is not None else x.dtype
    w1p = _block_diag(w1.astype(compute), P)
    w2p = _block_diag(w2.astype(compute), P)
    b1p = jnp.tile(b1.astype(jnp.float32), P).reshape(1, P * HL)
    b2p = jnp.tile(b2.astype(jnp.float32), P).reshape(1, P * OUT)

    tr = _tile_rows(rows, P, IN, HL, OUT, x.dtype.itemsize,
                    jnp.dtype(out_dtype).itemsize, block_b)
    grid = pl.cdiv(rows, tr)            # ragged final block handled by Pallas

    out = pl.pallas_call(
        _mlp_kernel,
        out_shape=jax.ShapeDtypeStruct((rows, P * OUT), jnp.dtype(out_dtype)),
        grid_spec=pltpu.PrefetchScalarGridSpec(
            num_scalar_prefetch=0,
            grid=(grid,),
            in_specs=[
                pl.BlockSpec((tr, P * IN), lambda i: (i, 0)),      # x: batch-tiled
                pl.BlockSpec((P * IN, P * HL), lambda i: (0, 0)),  # w1: resident
                pl.BlockSpec((1, P * HL), lambda i: (0, 0)),       # b1: resident
                pl.BlockSpec((P * HL, P * OUT), lambda i: (0, 0)), # w2: resident
                pl.BlockSpec((1, P * OUT), lambda i: (0, 0)),      # b2: resident
            ],
            out_specs=pl.BlockSpec((tr, P * OUT), lambda i: (i, 0)),
        ),
        compiler_params=pltpu.CompilerParams(
            dimension_semantics=("parallel",),     # megacore sharding on v7x
            vmem_limit_bytes=32 * 1024 * 1024,     # raise v5e's 16 MiB scoped default
        ),
    )(xp, w1p, b1p, w2p, b2p)

    return out.reshape(b_pad, OUT)[:B]


def init_params(key, in_features, hl, out_features, dtype=jnp.float32):
    """Deterministic init mimicking nn.Linear's default U(-1/sqrt(fan_in), +)."""
    k1, k2, k3, k4 = jax.random.split(key, 4)
    bound1 = 1.0 / (in_features ** 0.5)
    bound2 = 1.0 / (hl ** 0.5)
    # Stored as (in, out) so the kernel computes x @ W directly.
    w1 = jax.random.uniform(k1, (in_features, hl), dtype, -bound1, bound1)
    b1 = jax.random.uniform(k2, (hl,), dtype, -bound1, bound1)
    w2 = jax.random.uniform(k3, (hl, out_features), dtype, -bound2, bound2)
    b2 = jax.random.uniform(k4, (out_features,), dtype, -bound2, bound2)
    return w1, b1, w2, b2


if __name__ == "__main__":
    key = jax.random.PRNGKey(0)
    kx, kx2, kp = jax.random.split(key, 3)

    IN, HL, OUT = 30, 32, 20            # hl = 32; tiny demo shapes
    w1, b1, w2, b2 = init_params(kp, IN, HL, OUT)

    def ref_fwd(xv):                    # pure-f32 PyTorch-equivalent math
        return jnp.maximum(xv @ w1 + b1, 0.0) @ w2 + b2

    # Small batch: single grid step, packed layout (8 rows padded to 32).
    x = jax.random.normal(kx, (8, IN), jnp.float32)
    out = net_forward(x, w1, b1, w2, b2)
    jax.block_until_ready(out)
    assert out.shape == (8, OUT)
    err = jnp.max(jnp.abs(out.astype(jnp.float32) - ref_fwd(x)))
    assert jnp.allclose(out.astype(jnp.float32), ref_fwd(x), atol=3e-2, rtol=3e-2), float(err)

    # Larger, misaligned batch: exercises padding, multi-step grid and the
    # ragged final block (block_b shrunk so grid > 1 at this size).
    x2 = jax.random.normal(kx2, (2500, IN), jnp.float32)
    out2 = net_forward(x2, w1, b1, w2, b2, block_b=1024)
    jax.block_until_ready(out2)
    assert out2.shape == (2500, OUT)
    err2 = jnp.max(jnp.abs(out2.astype(jnp.float32) - ref_fwd(x2)))
    assert jnp.allclose(out2.astype(jnp.float32), ref_fwd(x2), atol=3e-2, rtol=3e-2), float(err2)

    print("KERNEL_OK")
</pallas_src>

<mosaic_0001>
module attributes {stable_mosaic.version = 11 : i64} {
  func.func @_mlp_kernel(%arg0: i32, %arg1: memref<8x120xf32, #tpu.memory_space<vmem>>, %arg2: memref<120x128xf32, #tpu.memory_space<vmem>>, %arg3: memref<1x128xf32, #tpu.memory_space<vmem>>, %arg4: memref<128x80xf32, #tpu.memory_space<vmem>>, %arg5: memref<1x80xf32, #tpu.memory_space<vmem>>, %arg6: memref<8x80xbf16, #tpu.memory_space<vmem>>) attributes {dimension_semantics = [#tpu.dimension_semantics<parallel>], iteration_bounds = array<i64: 1>, scalar_prefetch = 0 : i64, scratch_operands = 0 : i64, tpu.core_type = #tpu.core_type<tc>, window_params = [{transform_indices = @transform_0, window_bounds = array<i64: 8, 120>}, {pipeline_mode = #tpu.pipeline_mode<synchronous>, transform_indices = @transform_1, window_bounds = array<i64: 120, 128>}, {pipeline_mode = #tpu.pipeline_mode<synchronous>, transform_indices = @transform_2, window_bounds = array<i64: 1, 128>}, {pipeline_mode = #tpu.pipeline_mode<synchronous>, transform_indices = @transform_3, window_bounds = array<i64: 128, 80>}, {pipeline_mode = #tpu.pipeline_mode<synchronous>, transform_indices = @transform_4, window_bounds = array<i64: 1, 80>}, {transform_indices = @transform_5, window_bounds = array<i64: 8, 80>}]} {
    %c0 = arith.constant 0 : index
    %c0_0 = arith.constant 0 : index
    %0 = vector.load %arg1[%c0, %c0_0] : memref<8x120xf32, #tpu.memory_space<vmem>>, vector<8x120xf32>
    %c0_1 = arith.constant 0 : index
    %c0_2 = arith.constant 0 : index
    %1 = vector.load %arg2[%c0_1, %c0_2] : memref<120x128xf32, #tpu.memory_space<vmem>>, vector<120x128xf32>
    %cst = arith.constant dense<0.000000e+00> : vector<8x128xf32>
    %2 = tpu.matmul %0, %1, %cst {dimension_numbers = #tpu.dot_dimension_numbers<[1], [0], [0], [1], [0, 0, 1, 1], [], []>} : vector<8x120xf32>, vector<120x128xf32>, vector<8x128xf32> -> vector<8x128xf32>
    %c0_3 = arith.constant 0 : index
    %c0_4 = arith.constant 0 : index
    %3 = vector.load %arg3[%c0_3, %c0_4] : memref<1x128xf32, #tpu.memory_space<vmem>>, vector<1x128xf32>
    %4 = vector.broadcast %3 : vector<1x128xf32> to vector<8x128xf32>
    %5 = arith.addf %2, %4 : vector<8x128xf32>
    %cst_5 = arith.constant 0.000000e+00 : f32
    %6 = vector.broadcast %cst_5 : f32 to vector<8x128xf32>
    %7 = arith.maximumf %5, %6 : vector<8x128xf32>
    %c0_6 = arith.constant 0 : index
    %c0_7 = arith.constant 0 : index
    %8 = vector.load %arg4[%c0_6, %c0_7] : memref<128x80xf32, #tpu.memory_space<vmem>>, vector<128x80xf32>
    %cst_8 = arith.constant dense<0.000000e+00> : vector<8x80xf32>
    %9 = tpu.matmul %7, %8, %cst_8 {dimension_numbers = #tpu.dot_dimension_numbers<[1], [0], [0], [1], [0, 0, 1, 1], [], []>} : vector<8x128xf32>, vector<128x80xf32>, vector<8x80xf32> -> vector<8x80xf32>
    %c0_9 = arith.constant 0 : index
    %c0_10 = arith.constant 0 : index
    %10 = vector.load %arg5[%c0_9, %c0_10] : memref<1x80xf32, #tpu.memory_space<vmem>>, vector<1x80xf32>
    %11 = vector.broadcast %10 : vector<1x80xf32> to vector<8x80xf32>
    %12 = arith.addf %9, %11 : vector<8x80xf32>
    %13 = arith.truncf %12 : vector<8x80xf32> to vector<8x80xbf16>
    %c0_11 = arith.constant 0 : index
    %c0_12 = arith.constant 0 : index
    %14 = vector.load %arg6[%c0_11, %c0_12] : memref<8x80xbf16, #tpu.memory_space<vmem>>, vector<8x80xbf16>
    tpu.vector_store %arg6[%c0_11, %c0_12], %13 {strides = array<i32>} : memref<8x80xbf16, #tpu.memory_space<vmem>>, vector<8x80xbf16>,
    return
  }
  func.func @transform_0(%arg0: i32) -> (i32, i32) {
    %c0_i32 = arith.constant 0 : i32
    %c0_i32_0 = arith.constant 0 : i32
    return %arg0, %c0_i32 : i32, i32
  }
  func.func @transform_1(%arg0: i32) -> (i32, i32) {
    %c0_i32 = arith.constant 0 : i32
    %c0_i32_0 = arith.constant 0 : i32
    %c0_i32_1 = arith.constant 0 : i32
    return %c0_i32, %c0_i32_0 : i32, i32
  }
  func.func @transform_2(%arg0: i32) -> (i32, i32) {
    %c0_i32 = arith.constant 0 : i32
    %c0_i32_0 = arith.constant 0 : i32
    %c0_i32_1 = arith.constant 0 : i32
    return %c0_i32, %c0_i32_0 : i32, i32
  }
  func.func @transform_3(%arg0: i32) -> (i32, i32) {
    %c0_i32 = arith.constant 0 : i32
    %c0_i32_0 = arith.constant 0 : i32
    %c0_i32_1 = arith.constant 0 : i32
    return %c0_i32, %c0_i32_0 : i32, i32
  }
  func.func @transform_4(%arg0: i32) -> (i32, i32) {
    %c0_i32 = arith.constant 0 : i32
    %c0_i32_0 = arith.constant 0 : i32
    %c0_i32_1 = arith.constant 0 : i32
    return %c0_i32, %c0_i32_0 : i32, i32
  }
  func.func @transform_5(%arg0: i32) -> (i32, i32) {
    %c0_i32 = arith.constant 0 : i32
    %c0_i32_0 = arith.constant 0 : i32
    return %arg0, %c0_i32 : i32, i32
  }
}

</mosaic_0001>

<llo_original>
// kernel: tile.13
$region0: #{tile.13}
  #allocation0 [shape = 's32[1]{0}', space=sflag, size = 0x4, scoped, tag = 'scoped memory for tile.13']
  %s0 = inlined_call_operand.vmem [shape: f32[32], index: 0, kind: input, shape index: {}]
  %s1 = inlined_call_operand.vmem [shape: f32[4,32], index: 1, kind: output, shape index: {}]
  // Predicated region
  $region2: #{tile.13} parent=0 // pred_check
    _
  $region3: #{tile.13} parent=0 // pred_check_branch
    %3 = sbr.rel (0) target = $region5
  $region4: #{tile.13} parent=0 // pred_region
    _
  $region5: #{tile.13} parent=0 // pred_fallthru
    _
  %v4 = vld [vmem:[%s0] ss:$0 sm:$0xff]
  %5 = vst [vmem:[%s1] sm:$0xf] %v4

// kernel: tile.14
$region0: #{tile.14}
  %s0 = inlined_call_operand.vmem [shape: f32[4,32], index: 0, kind: input, shape index: {}]
  %s1 = inlined_call_operand.vmem [shape: f32[1,128], index: 1, kind: output, shape index: {}]
  $region1: #{tile.14} parent=0
    #allocation0 [shape = 'u8[4096]{0}', space=vmem, size = 0x1000, scoped, tag = 'scoped mem for output reshape']
    #allocation1 [shape = 'u8[4096]{0}', space=vmem, size = 0x1000, scoped, tag = 'scoped mem for input reshape']
    %s3 = sshllo.u32 0, 4
    %v4 = vld [vmem:[%s0] sm:%s3]
    %5 = vst [vmem:[#allocation1] sm:%s3] %v4
    %v6 = vld [vmem:[#allocation1] sm:$0x1]
    %vm7 = vcmask 261120
    %8 = vst.msk [vmem:[#allocation0] sm:$0x1] %vm7, %v6
    %s9 = scalar_lea.vmem [#allocation1], 3
    %v10 = vld [vmem:[%s9] sm:$0x1]
    %11 = vrot.lane.b32.xlu0 %v10, 96
    %v12 = vpop.permute.xlu0 %11
    %vm13 = vcmask 1048320
    %14 = vst.msk [vmem:[#allocation0] sm:$0x1] %vm13, %v12
    %s15 = scalar_lea.vmem [#allocation1], 2
    %v16 = vld [vmem:[%s15] sm:$0x1]
    %17 = vrot.lane.b32.xlu0 %v16, 64
    %v18 = vpop.permute.xlu0 %17
    %vm19 = vcmask 785920
    %20 = vst.msk [vmem:[#allocation0] sm:$0x1] %vm19, %v18
    %s21 = scalar_lea.vmem [#allocation1], 1
    %v22 = vld [vmem:[%s21] sm:$0x1]
    %23 = vrot.lane.b32.xlu0 %v22, 32
    %v24 = vpop.permute.xlu0 %23
    %vm25 = vcmask 523520
    %26 = vst.msk [vmem:[#allocation0] sm:$0x1] %vm25, %v24
    %s28 = sshllo.u32 0, 1
    %v30 = vld [vmem:[#allocation0] sm:%s28]
    %s31 = sshllo.u32 0, 1
    %32 = vst [vmem:[%s1] sm:%s31] %v30

// kernel: tile.18
$region0: #{tile.18}
  #allocation0 [shape = 's32[1]{0}', space=sflag, size = 0x4, scoped, tag = 'scoped memory for tile.18']
  %s0 = inlined_call_operand.vmem [shape: f32[20], index: 0, kind: input, shape index: {}]
  %s1 = inlined_call_operand.vmem [shape: f32[4,20], index: 1, kind: output, shape index: {}]
  // Predicated region
  $region2: #{tile.18} parent=0 // pred_check
    _
  $region3: #{tile.18} parent=0 // pred_check_branch
    %3 = sbr.rel (0) target = $region5
  $region4: #{tile.18} parent=0 // pred_region
    _
  $region5: #{tile.18} parent=0 // pred_fallthru
    _
  %v4 = vld [vmem:[%s0] ss:$0 sm:$0xff]
  %5 = vst [vmem:[%s1] sm:$0xf] %v4

// kernel: tile.19
$region0: #{tile.19}
  %s0 = inlined_call_operand.vmem [shape: f32[4,20], index: 0, kind: input, shape index: {}]
  %s1 = inlined_call_operand.vmem [shape: f32[1,80], index: 1, kind: output, shape index: {}]
  $region1: #{tile.19} parent=0
    #allocation0 [shape = 'u8[4096]{0}', space=vmem, size = 0x1000, scoped, tag = 'scoped mem for output reshape']
    #allocation1 [shape = 'u8[4096]{0}', space=vmem, size = 0x1000, scoped, tag = 'scoped mem for input reshape']
    %s3 = sshllo.u32 0, 4
    %v4 = vld [vmem:[%s0] sm:%s3]
    %5 = vst [vmem:[#allocation1] sm:%s3] %v4
    %v6 = vld [vmem:[#allocation1] sm:$0x1]
    %vm7 = vcmask 162816
    %8 = vst.msk [vmem:[#allocation0] sm:$0x1] %vm7, %v6
    %s9 = scalar_lea.vmem [#allocation1], 3
    %v10 = vld [vmem:[%s9] sm:$0x1]
    %11 = vrot.lane.b32.xlu0 %v10, 60
    %v12 = vpop.permute.xlu0 %11
    %vm13 = vcmask 654816
    %14 = vst.msk [vmem:[#allocation0] sm:$0x1] %vm13, %v12
    %s15 = scalar_lea.vmem [#allocation1], 2
    %v16 = vld [vmem:[%s15] sm:$0x1]
    %17 = vrot.lane.b32.xlu0 %v16, 40
    %v18 = vpop.permute.xlu0 %17
    %vm19 = vcmask 490816
    %20 = vst.msk [vmem:[#allocation0] sm:$0x1] %vm19, %v18
    %s21 = scalar_lea.vmem [#allocation1], 1
    %v22 = vld [vmem:[%s21] sm:$0x1]
    %23 = vrot.lane.b32.xlu0 %v22, 20
    %v24 = vpop.permute.xlu0 %23
    %vm25 = vcmask 326816
    %26 = vst.msk [vmem:[#allocation0] sm:$0x1] %vm25, %v24
    %s28 = sshllo.u32 0, 1
    %v30 = vld [vmem:[#allocation0] sm:%s28]
    %s31 = sshllo.u32 0, 1
    %32 = vst [vmem:[%s1] sm:%s31] %v30

// kernel: net_forward.1
$region0: #{net_forward.1}
  #allocation0 [shape = 'u32[]', space=smem, size = 0x4, offset = 0x4, fixed_abs, tag = 'smem constant byte address 0x4 - core index']
  #allocation1 [shape = 'u32[144,128]{1,0:T(1,128)}', space=vmem, size = 0x12000, scoped, tag = 'internal scratch']
  %s0 = inlined_call_operand.vmem [shape: f32[8,120], index: 0, kind: input, shape index: {}]
  %s1 = inlined_call_operand.vmem [shape: f32[120,128], index: 1, kind: input, shape index: {}]
  %s2 = inlined_call_operand.vmem [shape: f32[1,128], index: 2, kind: input, shape index: {}]
  %s3 = inlined_call_operand.vmem [shape: f32[128,80], index: 3, kind: input, shape index: {}]
  %s4 = inlined_call_operand.vmem [shape: f32[1,80], index: 4, kind: input, shape index: {}]
  %s5 = inlined_call_operand.vmem [shape: bf16[8,80], index: 5, kind: output, shape index: {}]
  %s6 = sld [smem:[#allocation0]]
  $region30: #{net_forward.1} parent=0
    _
  %s8 = ssub.s32 1, %s6
  %s9 = scalar_select 0, %s8, %s6
  // Predicated region
  $region2: #{net_forward.1} parent=0 // pred_check
    _
  $region3: #{net_forward.1} parent=0 // pred_check_branch
    %11 = sbr.rel (0) target = $region5
  $region4: #{net_forward.1} parent=0 // pred_region
    _
  $region5: #{net_forward.1} parent=0 // pred_fallthru
    _
  // Predicated region
  $region6: #{net_forward.1} parent=0 // pred_check
    _
  $region7: #{net_forward.1} parent=0 // pred_check_branch
    %13 = sbr.rel (0) target = $region9
  $region8: #{net_forward.1} parent=0 // pred_region
    _
  $region9: #{net_forward.1} parent=0 // pred_fallthru
    _
  // Predicated region
  $region10: #{net_forward.1} parent=0 // pred_check
    _
  $region11: #{net_forward.1} parent=0 // pred_check_branch
    %15 = sbr.rel (0) target = $region13
  $region12: #{net_forward.1} parent=0 // pred_region
    _
  $region13: #{net_forward.1} parent=0 // pred_fallthru
    _
  // Predicated region
  $region14: #{net_forward.1} parent=0 // pred_check
    _
  $region15: #{net_forward.1} parent=0 // pred_check_branch
    %17 = sbr.rel (0) target = $region17
  $region16: #{net_forward.1} parent=0 // pred_region
    _
  $region17: #{net_forward.1} parent=0 // pred_fallthru
    _
  // Predicated region
  $region18: #{net_forward.1} parent=0 // pred_check
    _
  $region19: #{net_forward.1} parent=0 // pred_check_branch
    %19 = sbr.rel (0) target = $region21
  $region20: #{net_forward.1} parent=0 // pred_region
    _
  $region21: #{net_forward.1} parent=0 // pred_fallthru
    _
  %v20 = vld [vmem:[%s0] sm:$0xff]
  %v21 = vld [vmem:[%s1] sm:$0xff]
  %v22 = vld [vmem:[%s1 + $0x8] sm:$0xff]
  %v23 = vld [vmem:[%s1 + $0x10] sm:$0xff]
  %v24 = vld [vmem:[%s1 + $0x18] sm:$0xff]
  %v25 = vld [vmem:[%s1 + $0x20] sm:$0xff]
  %v26 = vld [vmem:[%s1 + $0x28] sm:$0xff]
  %v27 = vld [vmem:[%s1 + $0x30] sm:$0xff]
  %v28 = vld [vmem:[%s1 + $0x38] sm:$0xff]
  %v29 = vld [vmem:[%s1 + $0x40] sm:$0xff]
  %v30 = vld [vmem:[%s1 + $0x48] sm:$0xff]
  %v31 = vld [vmem:[%s1 + $0x50] sm:$0xff]
  %v32 = vld [vmem:[%s1 + $0x58] sm:$0xff]
  %v33 = vld [vmem:[%s1 + $0x60] sm:$0xff]
  %v34 = vld [vmem:[%s1 + $0x68] sm:$0xff]
  %v35 = vld [vmem:[%s1 + $0x70] sm:$0xff]
  %v36 = vld [vmem:[%s2] sm:$0x1]
  %v38 = vlaneseq
  %v39 = vshrl.u32 %v38, 7
  %v40 = vsub.s32 0, %v39
  %v41 = vrot.slane %v36, %v40
  %vm43 = vcmask 982016
  %v45 = vsel %vm43, %v20, 0
  %47 = vmatprep.subr.mxu0 0.0
  %48 = vmatpush1.msra.mxu0 %v21
  %49 = vmatprep.subr.mxu0 0.0
  %50 = vmatpush1.msra.mxu0 %v22
  %51 = vmatprep.subr.mxu0 0.0
  %52 = vmatpush1.msra.mxu0 %v23
  %53 = vmatprep.subr.mxu0 0.0
  %54 = vmatpush1.msra.mxu0 %v24
  %55 = vmatprep.subr.mxu0 0.0
  %56 = vmatpush1.msra.mxu0 %v25
  %57 = vmatprep.subr.mxu0 0.0
  %58 = vmatpush1.msra.mxu0 %v26
  %59 = vmatprep.subr.mxu0 0.0
  %60 = vmatpush1.msra.mxu0 %v27
  %61 = vmatprep.subr.mxu0 0.0
  %62 = vmatpush1.msra.mxu0 %v28
  %63 = vmatprep.subr.mxu0 0.0
  %64 = vmatpush1.msra.mxu0 %v29
  %65 = vmatprep.subr.mxu0 0.0
  %66 = vmatpush1.msra.mxu0 %v30
  %67 = vmatprep.subr.mxu0 0.0
  %68 = vmatpush1.msra.mxu0 %v31
  %69 = vmatprep.subr.mxu0 0.0
  %70 = vmatpush1.msra.mxu0 %v32
  %71 = vmatprep.subr.mxu0 0.0
  %72 = vmatpush1.msra.mxu0 %v33
  %73 = vmatprep.subr.mxu0 0.0
  %74 = vmatpush1.msra.mxu0 %v34
  %75 = vmatprep.subr.mxu0 0.0
  %76 = vmatpush1.msra.mxu0 %v35
  %77 = vmatprep.subr.mxu0 0.0
  %78 = vmatpush1.msra.mxu0 0.0
  %79 = vmatprep.subr.mxu0 0.0
  %80 = vmatpush1.msra.mxu0 0.0
  %81 = vmatprep.subr.mxu0 0.0
  %82 = vmatpush1.msra.mxu0 0.0
  %83 = vmatprep.subr.mxu0 0.0
  %84 = vmatpush1.msra.mxu0 0.0
  %85 = vmatprep.subr.mxu0 0.0
  %86 = vmatpush1.msra.mxu0 0.0
  %87 = vmatprep.subr.mxu0 0.0
  %88 = vmatpush1.msra.mxu0 0.0
  %89 = vmatprep.subr.mxu0 0.0
  %90 = vmatpush1.msra.mxu0 0.0
  %91 = vmatprep.subr.mxu0 0.0
  %92 = vmatpush1.msra.mxu0 0.0
  %93 = vmatprep.subr.mxu0 0.0
  %94 = vmatpush1.msra.mxu0 0.0
  %95 = vmatprep.subr.mxu0 0.0
  %96 = vmatpush1.msra.mxu0 0.0
  %97 = vmatprep.subr.mxu0 0.0
  %98 = vmatpush1.msra.mxu0 0.0
  %99 = vmatprep.subr.mxu0 0.0
  %100 = vmatpush1.msra.mxu0 0.0
  %101 = vmatprep.subr.mxu0 0.0
  %102 = vmatpush1.msra.mxu0 0.0
  %103 = vmatprep.subr.mxu0 0.0
  %104 = vmatpush1.msra.mxu0 0.0
  %105 = vmatprep.subr.mxu0 0.0
  %106 = vmatpush1.msra.mxu0 0.0
  %107 = vmatprep.subr.mxu0 0.0
  %108 = vmatpush1.msra.mxu0 0.0
  %109 = vmatprep.subr.mxu0 0.0
  %110 = vmatpush1.msra.mxu0 0.0
  %111 = vmatprep.mubr.f32.mxu0 0.0
  %112 = vmatmul.mubr.f32.gmra.mrb[0].mxu0 %v45
  %v113 = vpop.f32.mrb[0].mxu0
  %v114 = vadd.f32 %v41, %v113
  %v115 = vpop.f32.mrb[0].mxu0
  %116 = vdwg.mxu0
  %v117 = vmax.f32 %v114, 0.0
  %v118 = vld [vmem:[%s3] sm:$0xff]
  %v119 = vld [vmem:[%s3 + $0x8] sm:$0xff]
  %v120 = vld [vmem:[%s3 + $0x10] sm:$0xff]
  %v121 = vld [vmem:[%s3 + $0x18] sm:$0xff]
  %v122 = vld [vmem:[%s3 + $0x20] sm:$0xff]
  %v123 = vld [vmem:[%s3 + $0x28] sm:$0xff]
  %v124 = vld [vmem:[%s3 + $0x30] sm:$0xff]
  %v125 = vld [vmem:[%s3 + $0x38] sm:$0xff]
  %v126 = vld [vmem:[%s3 + $0x40] sm:$0xff]
  %v127 = vld [vmem:[%s3 + $0x48] sm:$0xff]
  %v128 = vld [vmem:[%s3 + $0x50] sm:$0xff]
  %v129 = vld [vmem:[%s3 + $0x58] sm:$0xff]
  %v130 = vld [vmem:[%s3 + $0x60] sm:$0xff]
  %v131 = vld [vmem:[%s3 + $0x68] sm:$0xff]
  %v132 = vld [vmem:[%s3 + $0x70] sm:$0xff]
  %v133 = vld [vmem:[%s3 + $0x78] sm:$0xff]
  %v134 = vld [vmem:[%s4] sm:$0x1]
  %v136 = vlaneseq
  %v137 = vshrl.u32 %v136, 7
  %v138 = vsub.s32 0, %v137
  %v139 = vrot.slane %v134, %v138
  %141 = vmatprep.subr.mxu0 0.0
  %142 = vmatpush1.msra.mxu0 %v118
  %143 = vmatprep.subr.mxu0 0.0
  %144 = vmatpush1.msra.mxu0 %v119
  %145 = vmatprep.subr.mxu0 0.0
  %146 = vmatpush1.msra.mxu0 %v120
  %147 = vmatprep.subr.mxu0 0.0
  %148 = vmatpush1.msra.mxu0 %v121
  %149 = vmatprep.subr.mxu0 0.0
  %150 = vmatpush1.msra.mxu0 %v122
  %151 = vmatprep.subr.mxu0 0.0
  %152 = vmatpush1.msra.mxu0 %v123
  %153 = vmatprep.subr.mxu0 0.0
  %154 = vmatpush1.msra.mxu0 %v124
  %155 = vmatprep.subr.mxu0 0.0
  %156 = vmatpush1.msra.mxu0 %v125
  %157 = vmatprep.subr.mxu0 0.0
  %158 = vmatpush1.msra.mxu0 %v126
  %159 = vmatprep.subr.mxu0 0.0
  %160 = vmatpush1.msra.mxu0 %v127
  %161 = vmatprep.subr.mxu0 0.0
  %162 = vmatpush1.msra.mxu0 %v128
  %163 = vmatprep.subr.mxu0 0.0
  %164 = vmatpush1.msra.mxu0 %v129
  %165 = vmatprep.subr.mxu0 0.0
  %166 = vmatpush1.msra.mxu0 %v130
  %167 = vmatprep.subr.mxu0 0.0
  %168 = vmatpush1.msra.mxu0 %v131
  %169 = vmatprep.subr.mxu0 0.0
  %170 = vmatpush1.msra.mxu0 %v132
  %171 = vmatprep.subr.mxu0 0.0
  %172 = vmatpush1.msra.mxu0 %v133
  %173 = vmatprep.subr.mxu0 0.0
  %174 = vmatpush1.msra.mxu0 0.0
  %175 = vmatprep.subr.mxu0 0.0
  %176 = vmatpush1.msra.mxu0 0.0
  %177 = vmatprep.subr.mxu0 0.0
  %178 = vmatpush1.msra.mxu0 0.0
  %179 = vmatprep.subr.mxu0 0.0
  %180 = vmatpush1.msra.mxu0 0.0
  %181 = vmatprep.subr.mxu0 0.0
  %182 = vmatpush1.msra.mxu0 0.0
  %183 = vmatprep.subr.mxu0 0.0
  %184 = vmatpush1.msra.mxu0 0.0
  %185 = vmatprep.subr.mxu0 0.0
  %186 = vmatpush1.msra.mxu0 0.0
  %187 = vmatprep.subr.mxu0 0.0
  %188 = vmatpush1.msra.mxu0 0.0
  %189 = vmatprep.subr.mxu0 0.0
  %190 = vmatpush1.msra.mxu0 0.0
  %191 = vmatprep.subr.mxu0 0.0
  %192 = vmatpush1.msra.mxu0 0.0
  %193 = vmatprep.subr.mxu0 0.0
  %194 = vmatpush1.msra.mxu0 0.0
  %195 = vmatprep.subr.mxu0 0.0
  %196 = vmatpush1.msra.mxu0 0.0
  %197 = vmatprep.subr.mxu0 0.0
  %198 = vmatpush1.msra.mxu0 0.0
  %199 = vmatprep.subr.mxu0 0.0
  %200 = vmatpush1.msra.mxu0 0.0
  %201 = vmatprep.subr.mxu0 0.0
  %202 = vmatpush1.msra.mxu0 0.0
  %203 = vmatprep.subr.mxu0 0.0
  %204 = vmatpush1.msra.mxu0 0.0
  %205 = vmatprep.mubr.f32.mxu0 0.0
  %206 = vmatmul.mubr.f32.gmra.mrb[0].mxu0 %v117
  %v207 = vpop.f32.mrb[0].mxu0
  %v208 = vadd.f32 %v139, %v207
  %v209 = vpop.f32.mrb[0].mxu0
  %210 = vdwg.mxu0
  %v211 = vpack.c.bf16 %v208, %v208
  %vm212 = vcmask 650240
  %213 = vst.msk [vmem:[%s5] sm:$0xf] %vm212, %v211
  // Predicated region
  $region22: #{net_forward.1} parent=0 // pred_check
    _
  $region23: #{net_forward.1} parent=0 // pred_check_branch
    %215 = sbr.rel (0) target = $region25
  $region24: #{net_forward.1} parent=0 // pred_region
    _
  $region25: #{net_forward.1} parent=0 // pred_fallthru
    _
  // Predicated region
  $region26: #{net_forward.1} parent=0 // pred_check
    _
  $region27: #{net_forward.1} parent=0 // pred_check_branch
    %217 = sbr.rel (0) target = $region29
  $region28: #{net_forward.1} parent=0 // pred_region
    _
  $region29: #{net_forward.1} parent=0 // pred_fallthru
    _

</llo_original>
